<compile_context>
chip_gen: v5e
topology: v5e:2x2
jax: 0.10.0
libtpu: 0.0.40
codegen_flags: <defaults>
</compile_context>

<pallas_src>
import functools

import jax
import jax.numpy as jnp
from jax.experimental import pallas as pl
from jax.experimental.pallas import tpu as pltpu  # noqa: F401  (TPU-specific tuning hooks)


def _lstm_classifier_kernel(ids_ref, emb_ref, wih_ref, whh_ref, b_ref,
                            wout_ref, bout_ref, out_ref, *,
                            seq_len, hidden_dim, vocab_size, b_pad):
    """Single-invocation fused embedding + LSTM + linear head.

    ids_ref   : (S*Bp, 1) int32   token ids, time-major, batch padded to Bp=8
    emb_ref   : (V, E)    f32     embedding table
    wih_ref   : (E, 4H)   f32     W_ih^T
    whh_ref   : (H, 4H)   f32     W_hh^T
    b_ref     : (1, 4H)   f32     b_ih + b_hh
    wout_ref  : (H, O)    f32     W_out^T
    bout_ref  : (1, O)    f32     b_out
    out_ref   : (Bp, O)   f32     linear(h_T), padded batch rows included
    """
    S, H, V, BP = seq_len, hidden_dim, vocab_size, b_pad

    # ---- Prologue 1: in-kernel embedding gather as a one-hot MXU matmul.
    ids = ids_ref[...]                                                 # (S*BP, 1)
    vocab_iota = jax.lax.broadcasted_iota(jnp.int32, (S * BP, V), 1)   # (S*BP, V)
    onehot = (vocab_iota == ids).astype(jnp.float32)                   # exact gather
    x = jnp.dot(onehot, emb_ref[...],
                preferred_element_type=jnp.float32)                    # (S*BP, E)

    # ---- Prologue 2: time-batched input projection, bias folded in.
    xproj = (jnp.dot(x, wih_ref[...], preferred_element_type=jnp.float32)
             + b_ref[...])                                             # (S*BP, 4H)

    w_hh = whh_ref[...]                                                # read once, hoisted
    # TODO(synk): hold w_hh weight-stationary via pltpu.matmul_push_rhs /
    # matmul_acc_lhs / matmul_pop once those lower robustly at (8,32)x(32,128).

    h = jnp.zeros((BP, H), jnp.float32)
    c = jnp.zeros((BP, H), jnp.float32)

    # ---- Recurrence: fully unrolled static time loop (S small & static).
    # Each xproj slab starts at a sublane-aligned offset t*8 -> whole vregs.
    for t in range(S):
        gates = xproj[t * BP:(t + 1) * BP, :] + jnp.dot(
            h, w_hh, preferred_element_type=jnp.float32)               # (BP, 4H)

        sig = jax.nn.sigmoid(gates)          # one full-width EUP pass
        i_g = sig[:, 0 * H:1 * H]
        f_g = sig[:, 1 * H:2 * H]
        o_g = sig[:, 3 * H:4 * H]
        g_g = jnp.tanh(gates[:, 2 * H:3 * H])  # tanh only on the g columns

        c = f_g * c + i_g * g_g
        h = o_g * jnp.tanh(c)

    # ---- Linear head on the final hidden state (fused, padded rows included).
    out_ref[...] = (jnp.dot(h, wout_ref[...], preferred_element_type=jnp.float32)
                    + bout_ref[...]).astype(out_ref.dtype)


def lstm_classifier_forward(sequence, params):
    """sequence: (batch, seq_len) int32 token ids -> (batch, output_size) f32."""
    emb_table = params["embedding"]          # (vocab, emb)
    w_ih = params["w_ih"]                    # (emb, 4H)
    w_hh = params["w_hh"]                    # (hidden, 4H)
    b = params["b"]                          # (1, 4H)  == b_ih + b_hh
    w_out = params["w_out"]                  # (hidden, output)
    b_out = params["b_out"]                  # (1, output)

    B, S = sequence.shape
    V, _E = emb_table.shape
    H = w_hh.shape[0]
    O = w_out.shape[1]

    # Pad the batch to the f32 sublane count so every per-step tile in the
    # kernel is a whole aligned (8, 128) vreg.  Pad rows read token 0 and run
    # through the (row-independent) recurrence; they are sliced off below.
    BP = ((B + 7) // 8) * 8
    ids_pad = jnp.zeros((S, BP), jnp.int32)
    ids_pad = ids_pad.at[:, :B].set(jnp.transpose(sequence).astype(jnp.int32))
    ids_flat = ids_pad.reshape(S * BP, 1)                              # time-major flat

    kernel = functools.partial(_lstm_classifier_kernel,
                               seq_len=S, hidden_dim=H,
                               vocab_size=V, b_pad=BP)

    # Single gridless invocation: every operand is a full-array VMEM block
    # (~80 KB total), zero per-step pipeline overhead, embedding fused in.
    out_pad = pl.pallas_call(
        kernel,
        out_shape=jax.ShapeDtypeStruct((BP, O), jnp.float32),
    )(ids_flat, emb_table.astype(jnp.float32), w_ih, w_hh, b, w_out, b_out)
    return out_pad[:B]


def _reference_forward(sequence, params):
    """Pure-JAX reference of the same forward pass (for correctness check)."""
    emb = jnp.take(params["embedding"], sequence, axis=0).astype(jnp.float32)
    x = jnp.transpose(emb, (1, 0, 2))  # (S, B, E)
    H = params["w_hh"].shape[0]
    B = sequence.shape[0]

    def step(carry, x_t):
        h, c = carry
        gates = x_t @ params["w_ih"] + h @ params["w_hh"] + params["b"]
        i = jax.nn.sigmoid(gates[:, 0 * H:1 * H])
        f = jax.nn.sigmoid(gates[:, 1 * H:2 * H])
        g = jnp.tanh(gates[:, 2 * H:3 * H])
        o = jax.nn.sigmoid(gates[:, 3 * H:4 * H])
        c = f * c + i * g
        h = o * jnp.tanh(c)
        return (h, c), None

    h0 = jnp.zeros((B, H), jnp.float32)
    c0 = jnp.zeros((B, H), jnp.float32)
    (h, _), _ = jax.lax.scan(step, (h0, c0), x)
    return h @ params["w_out"] + params["b_out"]


def init_params(key, vocab_size, emb_dim, hidden_dim, output_size):
    ks = jax.random.split(key, 7)
    scale = 0.1
    return {
        "embedding": scale * jax.random.normal(ks[0], (vocab_size, emb_dim), jnp.float32),
        "w_ih": scale * jax.random.normal(ks[1], (emb_dim, 4 * hidden_dim), jnp.float32),
        "w_hh": scale * jax.random.normal(ks[2], (hidden_dim, 4 * hidden_dim), jnp.float32),
        "b": scale * jax.random.normal(ks[3], (1, 4 * hidden_dim), jnp.float32)
             + scale * jax.random.normal(ks[4], (1, 4 * hidden_dim), jnp.float32),
        "w_out": scale * jax.random.normal(ks[5], (hidden_dim, output_size), jnp.float32),
        "b_out": scale * jax.random.normal(ks[6], (1, output_size), jnp.float32),
    }


if __name__ == "__main__":
    # hparams: vocab_size=50, emb_dim=32, hidden_dim=32, output_size=4, batch=2, seq=8
    VOCAB, EMB, HID, OUT = 50, 32, 32, 4
    B, S = 2, 8

    key = jax.random.PRNGKey(0)
    pkey, skey = jax.random.split(key)
    params = init_params(pkey, VOCAB, EMB, HID, OUT)
    sequence = jax.random.randint(skey, (B, S), 0, VOCAB, dtype=jnp.int32)

    out = lstm_classifier_forward(sequence, params)
    out = jax.block_until_ready(out)

    ref = jax.block_until_ready(_reference_forward(sequence, params))
    assert out.shape == (B, OUT)
    assert jnp.allclose(out, ref, atol=1e-3, rtol=1e-3)

    print("KERNEL_OK")
</pallas_src>

<mosaic_0001>
module attributes {stable_mosaic.version = 11 : i64} {
  func.func @_lstm_classifier_kernel(%arg0: memref<64x1xi32, #tpu.memory_space<vmem>>, %arg1: memref<50x32xf32, #tpu.memory_space<vmem>>, %arg2: memref<32x128xf32, #tpu.memory_space<vmem>>, %arg3: memref<32x128xf32, #tpu.memory_space<vmem>>, %arg4: memref<1x128xf32, #tpu.memory_space<vmem>>, %arg5: memref<32x4xf32, #tpu.memory_space<vmem>>, %arg6: memref<1x4xf32, #tpu.memory_space<vmem>>, %arg7: memref<8x4xf32, #tpu.memory_space<vmem>>) attributes {dimension_semantics = [], scalar_prefetch = 0 : i64, scratch_operands = 0 : i64, tpu.core_type = #tpu.core_type<tc>} {
    %c0 = arith.constant 0 : index
    %c0_0 = arith.constant 0 : index
    %0 = vector.load %arg0[%c0, %c0_0] : memref<64x1xi32, #tpu.memory_space<vmem>>, vector<64x1xi32>
    %1 = tpu.iota {dimensions = array<i32: 1>} : vector<64x50xi32>
    %2 = vector.broadcast %0 : vector<64x1xi32> to vector<64x50xi32>
    %3 = arith.cmpi eq, %1, %2 : vector<64x50xi32>
    %4 = arith.extui %3 : vector<64x50xi1> to vector<64x50xi32>
    %5 = arith.sitofp %4 : vector<64x50xi32> to vector<64x50xf32>
    %c0_1 = arith.constant 0 : index
    %c0_2 = arith.constant 0 : index
    %6 = vector.load %arg1[%c0_1, %c0_2] : memref<50x32xf32, #tpu.memory_space<vmem>>, vector<50x32xf32>
    %cst = arith.constant dense<0.000000e+00> : vector<64x32xf32>
    %7 = tpu.matmul %5, %6, %cst {dimension_numbers = #tpu.dot_dimension_numbers<[1], [0], [0], [1], [0, 0, 1, 1], [], []>} : vector<64x50xf32>, vector<50x32xf32>, vector<64x32xf32> -> vector<64x32xf32>
    %c0_3 = arith.constant 0 : index
    %c0_4 = arith.constant 0 : index
    %8 = vector.load %arg2[%c0_3, %c0_4] : memref<32x128xf32, #tpu.memory_space<vmem>>, vector<32x128xf32>
    %cst_5 = arith.constant dense<0.000000e+00> : vector<64x128xf32>
    %9 = tpu.matmul %7, %8, %cst_5 {dimension_numbers = #tpu.dot_dimension_numbers<[1], [0], [0], [1], [0, 0, 1, 1], [], []>} : vector<64x32xf32>, vector<32x128xf32>, vector<64x128xf32> -> vector<64x128xf32>
    %c0_6 = arith.constant 0 : index
    %c0_7 = arith.constant 0 : index
    %10 = vector.load %arg4[%c0_6, %c0_7] : memref<1x128xf32, #tpu.memory_space<vmem>>, vector<1x128xf32>
    %11 = vector.broadcast %10 : vector<1x128xf32> to vector<64x128xf32>
    %12 = arith.addf %9, %11 : vector<64x128xf32>
    %c0_8 = arith.constant 0 : index
    %c0_9 = arith.constant 0 : index
    %13 = vector.load %arg3[%c0_8, %c0_9] : memref<32x128xf32, #tpu.memory_space<vmem>>, vector<32x128xf32>
    %cst_10 = arith.constant 0.000000e+00 : f32
    %14 = vector.broadcast %cst_10 : f32 to vector<8x32xf32>
    %cst_11 = arith.constant 0.000000e+00 : f32
    %15 = vector.broadcast %cst_11 : f32 to vector<8x32xf32>
    %16 = vector.extract_strided_slice %12 {offsets = [0, 0], sizes = [8, 128], strides = [1, 1]} : vector<64x128xf32> to vector<8x128xf32>
    %cst_12 = arith.constant dense<0.000000e+00> : vector<8x128xf32>
    %17 = tpu.matmul %14, %13, %cst_12 {dimension_numbers = #tpu.dot_dimension_numbers<[1], [0], [0], [1], [0, 0, 1, 1], [], []>} : vector<8x32xf32>, vector<32x128xf32>, vector<8x128xf32> -> vector<8x128xf32>
    %18 = arith.addf %16, %17 : vector<8x128xf32>
    %19 = arith.negf %18 : vector<8x128xf32>
    %20 = math.exp %19 : vector<8x128xf32>
    %cst_13 = arith.constant 1.000000e+00 : f32
    %21 = vector.broadcast %cst_13 : f32 to vector<8x128xf32>
    %22 = arith.addf %21, %20 : vector<8x128xf32>
    %23 = arith.divf %21, %22 : vector<8x128xf32>
    %24 = vector.extract_strided_slice %23 {offsets = [0, 0], sizes = [8, 32], strides = [1, 1]} : vector<8x128xf32> to vector<8x32xf32>
    %25 = vector.extract_strided_slice %23 {offsets = [0, 32], sizes = [8, 32], strides = [1, 1]} : vector<8x128xf32> to vector<8x32xf32>
    %26 = vector.extract_strided_slice %23 {offsets = [0, 96], sizes = [8, 32], strides = [1, 1]} : vector<8x128xf32> to vector<8x32xf32>
    %27 = vector.extract_strided_slice %18 {offsets = [0, 64], sizes = [8, 32], strides = [1, 1]} : vector<8x128xf32> to vector<8x32xf32>
    %28 = math.tanh %27 : vector<8x32xf32>
    %29 = arith.mulf %25, %15 : vector<8x32xf32>
    %30 = arith.mulf %24, %28 : vector<8x32xf32>
    %31 = arith.addf %29, %30 : vector<8x32xf32>
    %32 = math.tanh %31 : vector<8x32xf32>
    %33 = arith.mulf %26, %32 : vector<8x32xf32>
    %34 = vector.extract_strided_slice %12 {offsets = [8, 0], sizes = [8, 128], strides = [1, 1]} : vector<64x128xf32> to vector<8x128xf32>
    %cst_14 = arith.constant dense<0.000000e+00> : vector<8x128xf32>
    %35 = tpu.matmul %33, %13, %cst_14 {dimension_numbers = #tpu.dot_dimension_numbers<[1], [0], [0], [1], [0, 0, 1, 1], [], []>} : vector<8x32xf32>, vector<32x128xf32>, vector<8x128xf32> -> vector<8x128xf32>
    %36 = arith.addf %34, %35 : vector<8x128xf32>
    %37 = arith.negf %36 : vector<8x128xf32>
    %38 = math.exp %37 : vector<8x128xf32>
    %cst_15 = arith.constant 1.000000e+00 : f32
    %39 = vector.broadcast %cst_15 : f32 to vector<8x128xf32>
    %40 = arith.addf %39, %38 : vector<8x128xf32>
    %41 = arith.divf %39, %40 : vector<8x128xf32>
    %42 = vector.extract_strided_slice %41 {offsets = [0, 0], sizes = [8, 32], strides = [1, 1]} : vector<8x128xf32> to vector<8x32xf32>
    %43 = vector.extract_strided_slice %41 {offsets = [0, 32], sizes = [8, 32], strides = [1, 1]} : vector<8x128xf32> to vector<8x32xf32>
    %44 = vector.extract_strided_slice %41 {offsets = [0, 96], sizes = [8, 32], strides = [1, 1]} : vector<8x128xf32> to vector<8x32xf32>
    %45 = vector.extract_strided_slice %36 {offsets = [0, 64], sizes = [8, 32], strides = [1, 1]} : vector<8x128xf32> to vector<8x32xf32>
    %46 = math.tanh %45 : vector<8x32xf32>
    %47 = arith.mulf %43, %31 : vector<8x32xf32>
    %48 = arith.mulf %42, %46 : vector<8x32xf32>
    %49 = arith.addf %47, %48 : vector<8x32xf32>
    %50 = math.tanh %49 : vector<8x32xf32>
    %51 = arith.mulf %44, %50 : vector<8x32xf32>
    %52 = vector.extract_strided_slice %12 {offsets = [16, 0], sizes = [8, 128], strides = [1, 1]} : vector<64x128xf32> to vector<8x128xf32>
    %cst_16 = arith.constant dense<0.000000e+00> : vector<8x128xf32>
    %53 = tpu.matmul %51, %13, %cst_16 {dimension_numbers = #tpu.dot_dimension_numbers<[1], [0], [0], [1], [0, 0, 1, 1], [], []>} : vector<8x32xf32>, vector<32x128xf32>, vector<8x128xf32> -> vector<8x128xf32>
    %54 = arith.addf %52, %53 : vector<8x128xf32>
    %55 = arith.negf %54 : vector<8x128xf32>
    %56 = math.exp %55 : vector<8x128xf32>
    %cst_17 = arith.constant 1.000000e+00 : f32
    %57 = vector.broadcast %cst_17 : f32 to vector<8x128xf32>
    %58 = arith.addf %57, %56 : vector<8x128xf32>
    %59 = arith.divf %57, %58 : vector<8x128xf32>
    %60 = vector.extract_strided_slice %59 {offsets = [0, 0], sizes = [8, 32], strides = [1, 1]} : vector<8x128xf32> to vector<8x32xf32>
    %61 = vector.extract_strided_slice %59 {offsets = [0, 32], sizes = [8, 32], strides = [1, 1]} : vector<8x128xf32> to vector<8x32xf32>
    %62 = vector.extract_strided_slice %59 {offsets = [0, 96], sizes = [8, 32], strides = [1, 1]} : vector<8x128xf32> to vector<8x32xf32>
    %63 = vector.extract_strided_slice %54 {offsets = [0, 64], sizes = [8, 32], strides = [1, 1]} : vector<8x128xf32> to vector<8x32xf32>
    %64 = math.tanh %63 : vector<8x32xf32>
    %65 = arith.mulf %61, %49 : vector<8x32xf32>
    %66 = arith.mulf %60, %64 : vector<8x32xf32>
    %67 = arith.addf %65, %66 : vector<8x32xf32>
    %68 = math.tanh %67 : vector<8x32xf32>
    %69 = arith.mulf %62, %68 : vector<8x32xf32>
    %70 = vector.extract_strided_slice %12 {offsets = [24, 0], sizes = [8, 128], strides = [1, 1]} : vector<64x128xf32> to vector<8x128xf32>
    %cst_18 = arith.constant dense<0.000000e+00> : vector<8x128xf32>
    %71 = tpu.matmul %69, %13, %cst_18 {dimension_numbers = #tpu.dot_dimension_numbers<[1], [0], [0], [1], [0, 0, 1, 1], [], []>} : vector<8x32xf32>, vector<32x128xf32>, vector<8x128xf32> -> vector<8x128xf32>
    %72 = arith.addf %70, %71 : vector<8x128xf32>
    %73 = arith.negf %72 : vector<8x128xf32>
    %74 = math.exp %73 : vector<8x128xf32>
    %cst_19 = arith.constant 1.000000e+00 : f32
    %75 = vector.broadcast %cst_19 : f32 to vector<8x128xf32>
    %76 = arith.addf %75, %74 : vector<8x128xf32>
    %77 = arith.divf %75, %76 : vector<8x128xf32>
    %78 = vector.extract_strided_slice %77 {offsets = [0, 0], sizes = [8, 32], strides = [1, 1]} : vector<8x128xf32> to vector<8x32xf32>
    %79 = vector.extract_strided_slice %77 {offsets = [0, 32], sizes = [8, 32], strides = [1, 1]} : vector<8x128xf32> to vector<8x32xf32>
    %80 = vector.extract_strided_slice %77 {offsets = [0, 96], sizes = [8, 32], strides = [1, 1]} : vector<8x128xf32> to vector<8x32xf32>
    %81 = vector.extract_strided_slice %72 {offsets = [0, 64], sizes = [8, 32], strides = [1, 1]} : vector<8x128xf32> to vector<8x32xf32>
    %82 = math.tanh %81 : vector<8x32xf32>
    %83 = arith.mulf %79, %67 : vector<8x32xf32>
    %84 = arith.mulf %78, %82 : vector<8x32xf32>
    %85 = arith.addf %83, %84 : vector<8x32xf32>
    %86 = math.tanh %85 : vector<8x32xf32>
    %87 = arith.mulf %80, %86 : vector<8x32xf32>
    %88 = vector.extract_strided_slice %12 {offsets = [32, 0], sizes = [8, 128], strides = [1, 1]} : vector<64x128xf32> to vector<8x128xf32>
    %cst_20 = arith.constant dense<0.000000e+00> : vector<8x128xf32>
    %89 = tpu.matmul %87, %13, %cst_20 {dimension_numbers = #tpu.dot_dimension_numbers<[1], [0], [0], [1], [0, 0, 1, 1], [], []>} : vector<8x32xf32>, vector<32x128xf32>, vector<8x128xf32> -> vector<8x128xf32>
    %90 = arith.addf %88, %89 : vector<8x128xf32>
    %91 = arith.negf %90 : vector<8x128xf32>
    %92 = math.exp %91 : vector<8x128xf32>
    %cst_21 = arith.constant 1.000000e+00 : f32
    %93 = vector.broadcast %cst_21 : f32 to vector<8x128xf32>
    %94 = arith.addf %93, %92 : vector<8x128xf32>
    %95 = arith.divf %93, %94 : vector<8x128xf32>
    %96 = vector.extract_strided_slice %95 {offsets = [0, 0], sizes = [8, 32], strides = [1, 1]} : vector<8x128xf32> to vector<8x32xf32>
    %97 = vector.extract_strided_slice %95 {offsets = [0, 32], sizes = [8, 32], strides = [1, 1]} : vector<8x128xf32> to vector<8x32xf32>
    %98 = vector.extract_strided_slice %95 {offsets = [0, 96], sizes = [8, 32], strides = [1, 1]} : vector<8x128xf32> to vector<8x32xf32>
    %99 = vector.extract_strided_slice %90 {offsets = [0, 64], sizes = [8, 32], strides = [1, 1]} : vector<8x128xf32> to vector<8x32xf32>
    %100 = math.tanh %99 : vector<8x32xf32>
    %101 = arith.mulf %97, %85 : vector<8x32xf32>
    %102 = arith.mulf %96, %100 : vector<8x32xf32>
    %103 = arith.addf %101, %102 : vector<8x32xf32>
    %104 = math.tanh %103 : vector<8x32xf32>
    %105 = arith.mulf %98, %104 : vector<8x32xf32>
    %106 = vector.extract_strided_slice %12 {offsets = [40, 0], sizes = [8, 128], strides = [1, 1]} : vector<64x128xf32> to vector<8x128xf32>
    %cst_22 = arith.constant dense<0.000000e+00> : vector<8x128xf32>
    %107 = tpu.matmul %105, %13, %cst_22 {dimension_numbers = #tpu.dot_dimension_numbers<[1], [0], [0], [1], [0, 0, 1, 1], [], []>} : vector<8x32xf32>, vector<32x128xf32>, vector<8x128xf32> -> vector<8x128xf32>
    %108 = arith.addf %106, %107 : vector<8x128xf32>
    %109 = arith.negf %108 : vector<8x128xf32>
    %110 = math.exp %109 : vector<8x128xf32>
    %cst_23 = arith.constant 1.000000e+00 : f32
    %111 = vector.broadcast %cst_23 : f32 to vector<8x128xf32>
    %112 = arith.addf %111, %110 : vector<8x128xf32>
    %113 = arith.divf %111, %112 : vector<8x128xf32>
    %114 = vector.extract_strided_slice %113 {offsets = [0, 0], sizes = [8, 32], strides = [1, 1]} : vector<8x128xf32> to vector<8x32xf32>
    %115 = vector.extract_strided_slice %113 {offsets = [0, 32], sizes = [8, 32], strides = [1, 1]} : vector<8x128xf32> to vector<8x32xf32>
    %116 = vector.extract_strided_slice %113 {offsets = [0, 96], sizes = [8, 32], strides = [1, 1]} : vector<8x128xf32> to vector<8x32xf32>
    %117 = vector.extract_strided_slice %108 {offsets = [0, 64], sizes = [8, 32], strides = [1, 1]} : vector<8x128xf32> to vector<8x32xf32>
    %118 = math.tanh %117 : vector<8x32xf32>
    %119 = arith.mulf %115, %103 : vector<8x32xf32>
    %120 = arith.mulf %114, %118 : vector<8x32xf32>
    %121 = arith.addf %119, %120 : vector<8x32xf32>
    %122 = math.tanh %121 : vector<8x32xf32>
    %123 = arith.mulf %116, %122 : vector<8x32xf32>
    %124 = vector.extract_strided_slice %12 {offsets = [48, 0], sizes = [8, 128], strides = [1, 1]} : vector<64x128xf32> to vector<8x128xf32>
    %cst_24 = arith.constant dense<0.000000e+00> : vector<8x128xf32>
    %125 = tpu.matmul %123, %13, %cst_24 {dimension_numbers = #tpu.dot_dimension_numbers<[1], [0], [0], [1], [0, 0, 1, 1], [], []>} : vector<8x32xf32>, vector<32x128xf32>, vector<8x128xf32> -> vector<8x128xf32>
    %126 = arith.addf %124, %125 : vector<8x128xf32>
    %127 = arith.negf %126 : vector<8x128xf32>
    %128 = math.exp %127 : vector<8x128xf32>
    %cst_25 = arith.constant 1.000000e+00 : f32
    %129 = vector.broadcast %cst_25 : f32 to vector<8x128xf32>
    %130 = arith.addf %129, %128 : vector<8x128xf32>
    %131 = arith.divf %129, %130 : vector<8x128xf32>
    %132 = vector.extract_strided_slice %131 {offsets = [0, 0], sizes = [8, 32], strides = [1, 1]} : vector<8x128xf32> to vector<8x32xf32>
    %133 = vector.extract_strided_slice %131 {offsets = [0, 32], sizes = [8, 32], strides = [1, 1]} : vector<8x128xf32> to vector<8x32xf32>
    %134 = vector.extract_strided_slice %131 {offsets = [0, 96], sizes = [8, 32], strides = [1, 1]} : vector<8x128xf32> to vector<8x32xf32>
    %135 = vector.extract_strided_slice %126 {offsets = [0, 64], sizes = [8, 32], strides = [1, 1]} : vector<8x128xf32> to vector<8x32xf32>
    %136 = math.tanh %135 : vector<8x32xf32>
    %137 = arith.mulf %133, %121 : vector<8x32xf32>
    %138 = arith.mulf %132, %136 : vector<8x32xf32>
    %139 = arith.addf %137, %138 : vector<8x32xf32>
    %140 = math.tanh %139 : vector<8x32xf32>
    %141 = arith.mulf %134, %140 : vector<8x32xf32>
    %142 = vector.extract_strided_slice %12 {offsets = [56, 0], sizes = [8, 128], strides = [1, 1]} : vector<64x128xf32> to vector<8x128xf32>
    %cst_26 = arith.constant dense<0.000000e+00> : vector<8x128xf32>
    %143 = tpu.matmul %141, %13, %cst_26 {dimension_numbers = #tpu.dot_dimension_numbers<[1], [0], [0], [1], [0, 0, 1, 1], [], []>} : vector<8x32xf32>, vector<32x128xf32>, vector<8x128xf32> -> vector<8x128xf32>
    %144 = arith.addf %142, %143 : vector<8x128xf32>
    %145 = arith.negf %144 : vector<8x128xf32>
    %146 = math.exp %145 : vector<8x128xf32>
    %cst_27 = arith.constant 1.000000e+00 : f32
    %147 = vector.broadcast %cst_27 : f32 to vector<8x128xf32>
    %148 = arith.addf %147, %146 : vector<8x128xf32>
    %149 = arith.divf %147, %148 : vector<8x128xf32>
    %150 = vector.extract_strided_slice %149 {offsets = [0, 0], sizes = [8, 32], strides = [1, 1]} : vector<8x128xf32> to vector<8x32xf32>
    %151 = vector.extract_strided_slice %149 {offsets = [0, 32], sizes = [8, 32], strides = [1, 1]} : vector<8x128xf32> to vector<8x32xf32>
    %152 = vector.extract_strided_slice %149 {offsets = [0, 96], sizes = [8, 32], strides = [1, 1]} : vector<8x128xf32> to vector<8x32xf32>
    %153 = vector.extract_strided_slice %144 {offsets = [0, 64], sizes = [8, 32], strides = [1, 1]} : vector<8x128xf32> to vector<8x32xf32>
    %154 = math.tanh %153 : vector<8x32xf32>
    %155 = arith.mulf %151, %139 : vector<8x32xf32>
    %156 = arith.mulf %150, %154 : vector<8x32xf32>
    %157 = arith.addf %155, %156 : vector<8x32xf32>
    %158 = math.tanh %157 : vector<8x32xf32>
    %159 = arith.mulf %152, %158 : vector<8x32xf32>
    %c0_28 = arith.constant 0 : index
    %c0_29 = arith.constant 0 : index
    %160 = vector.load %arg5[%c0_28, %c0_29] : memref<32x4xf32, #tpu.memory_space<vmem>>, vector<32x4xf32>
    %cst_30 = arith.constant dense<0.000000e+00> : vector<8x4xf32>
    %161 = tpu.matmul %159, %160, %cst_30 {dimension_numbers = #tpu.dot_dimension_numbers<[1], [0], [0], [1], [0, 0, 1, 1], [], []>} : vector<8x32xf32>, vector<32x4xf32>, vector<8x4xf32> -> vector<8x4xf32>
    %c0_31 = arith.constant 0 : index
    %c0_32 = arith.constant 0 : index
    %162 = vector.load %arg6[%c0_31, %c0_32] : memref<1x4xf32, #tpu.memory_space<vmem>>, vector<1x4xf32>
    %163 = vector.broadcast %162 : vector<1x4xf32> to vector<8x4xf32>
    %164 = arith.addf %161, %163 : vector<8x4xf32>
    %c0_33 = arith.constant 0 : index
    %c0_34 = arith.constant 0 : index
    %165 = vector.load %arg7[%c0_33, %c0_34] : memref<8x4xf32, #tpu.memory_space<vmem>>, vector<8x4xf32>
    tpu.vector_store %arg7[%c0_33, %c0_34], %164 {strides = array<i32>} : memref<8x4xf32, #tpu.memory_space<vmem>>, vector<8x4xf32>,
    return
  }
}

</mosaic_0001>

<llo_original>
// kernel: tpu_custom_call.1
$region0: #{tpu_custom_call.1}
  #allocation0 [shape = 'u32[]', space=smem, size = 0x4, offset = 0x4, fixed_abs, tag = 'smem constant byte address 0x4 - core index']
  #allocation1 [shape = 'u32[72,128]{1,0:T(1,128)}', space=vmem, size = 0x9000, scoped, tag = 'internal scratch']
  %s0 = inlined_call_operand.vmem [shape: s32[64,1], index: 0, kind: input, shape index: {}]
  %s1 = inlined_call_operand.vmem [shape: f32[50,32], index: 1, kind: input, shape index: {}]
  %s2 = inlined_call_operand.vmem [shape: f32[32,128], index: 2, kind: input, shape index: {}]
  %s3 = inlined_call_operand.vmem [shape: f32[32,128], index: 3, kind: input, shape index: {}]
  %s4 = inlined_call_operand.vmem [shape: f32[1,128], index: 4, kind: input, shape index: {}]
  %s5 = inlined_call_operand.vmem [shape: f32[32,4], index: 5, kind: input, shape index: {}]
  %s6 = inlined_call_operand.vmem [shape: f32[1,4], index: 6, kind: input, shape index: {}]
  %s7 = inlined_call_operand.vmem [shape: f32[8,4], index: 7, kind: output, shape index: {}]
  %s8 = sld [smem:[#allocation0]]
  $region38: #{tpu_custom_call.1} parent=0
    _
  %s10 = ssub.s32 1, %s8
  %s11 = scalar_select 0, %s10, %s8
  // Predicated region
  $region2: #{tpu_custom_call.1} parent=0 // pred_check
    _
  $region3: #{tpu_custom_call.1} parent=0 // pred_check_branch
    %13 = sbr.rel (0) target = $region5
  $region4: #{tpu_custom_call.1} parent=0 // pred_region
    _
  $region5: #{tpu_custom_call.1} parent=0 // pred_fallthru
    _
  // Predicated region
  $region6: #{tpu_custom_call.1} parent=0 // pred_check
    _
  $region7: #{tpu_custom_call.1} parent=0 // pred_check_branch
    %15 = sbr.rel (0) target = $region9
  $region8: #{tpu_custom_call.1} parent=0 // pred_region
    _
  $region9: #{tpu_custom_call.1} parent=0 // pred_fallthru
    _
  // Predicated region
  $region10: #{tpu_custom_call.1} parent=0 // pred_check
    _
  $region11: #{tpu_custom_call.1} parent=0 // pred_check_branch
    %17 = sbr.rel (0) target = $region13
  $region12: #{tpu_custom_call.1} parent=0 // pred_region
    _
  $region13: #{tpu_custom_call.1} parent=0 // pred_fallthru
    _
  // Predicated region
  $region14: #{tpu_custom_call.1} parent=0 // pred_check
    _
  $region15: #{tpu_custom_call.1} parent=0 // pred_check_branch
    %19 = sbr.rel (0) target = $region17
  $region16: #{tpu_custom_call.1} parent=0 // pred_region
    _
  $region17: #{tpu_custom_call.1} parent=0 // pred_fallthru
    _
  // Predicated region
  $region18: #{tpu_custom_call.1} parent=0 // pred_check
    _
  $region19: #{tpu_custom_call.1} parent=0 // pred_check_branch
    %21 = sbr.rel (0) target = $region21
  $region20: #{tpu_custom_call.1} parent=0 // pred_region
    _
  $region21: #{tpu_custom_call.1} parent=0 // pred_fallthru
    _
  // Predicated region
  $region22: #{tpu_custom_call.1} parent=0 // pred_check
    _
  $region23: #{tpu_custom_call.1} parent=0 // pred_check_branch
    %23 = sbr.rel (0) target = $region25
  $region24: #{tpu_custom_call.1} parent=0 // pred_region
    _
  $region25: #{tpu_custom_call.1} parent=0 // pred_fallthru
    _
  // Predicated region
  $region26: #{tpu_custom_call.1} parent=0 // pred_check
    _
  $region27: #{tpu_custom_call.1} parent=0 // pred_check_branch
    %25 = sbr.rel (0) target = $region29
  $region28: #{tpu_custom_call.1} parent=0 // pred_region
    _
  $region29: #{tpu_custom_call.1} parent=0 // pred_fallthru
    _
  %v26 = vld [vmem:[%s0] sm:$0xff]
  %v27 = vld [vmem:[%s0 + $0x8] sm:$0xff]
  %v28 = vld [vmem:[%s0 + $0x10] sm:$0xff]
  %v29 = vld [vmem:[%s0 + $0x18] sm:$0xff]
  %v30 = vld [vmem:[%s0 + $0x20] sm:$0xff]
  %v31 = vld [vmem:[%s0 + $0x28] sm:$0xff]
  %v32 = vld [vmem:[%s0 + $0x30] sm:$0xff]
  %v33 = vld [vmem:[%s0 + $0x38] sm:$0xff]
  %v34 = vlaneseq
  %v35 = vand.u32 %v34, 127
  %36 = vset.pattern.permute.xlu0 0
  %37 = vperm.xlu0 %36, %v26
  %v38 = vpop.permute.xlu0 %37
  %39 = vset.pattern.permute.xlu0 0
  %40 = vperm.xlu0 %39, %v27
  %v41 = vpop.permute.xlu0 %40
  %42 = vset.pattern.permute.xlu0 0
  %43 = vperm.xlu0 %42, %v28
  %v44 = vpop.permute.xlu0 %43
  %45 = vset.pattern.permute.xlu0 0
  %46 = vperm.xlu0 %45, %v29
  %v47 = vpop.permute.xlu0 %46
  %48 = vset.pattern.permute.xlu0 0
  %49 = vperm.xlu0 %48, %v30
  %v50 = vpop.permute.xlu0 %49
  %51 = vset.pattern.permute.xlu0 0
  %52 = vperm.xlu0 %51, %v31
  %v53 = vpop.permute.xlu0 %52
  %54 = vset.pattern.permute.xlu0 0
  %55 = vperm.xlu0 %54, %v32
  %v56 = vpop.permute.xlu0 %55
  %57 = vset.pattern.permute.xlu0 0
  %58 = vperm.xlu0 %57, %v33
  %v59 = vpop.permute.xlu0 %58
  %vm60 = vcmp.eq.s32.totalorder %v35, %v38
  %vm61 = vcmp.eq.s32.totalorder %v35, %v41
  %vm62 = vcmp.eq.s32.totalorder %v35, %v44
  %vm63 = vcmp.eq.s32.totalorder %v35, %v47
  %vm64 = vcmp.eq.s32.totalorder %v35, %v50
  %vm65 = vcmp.eq.s32.totalorder %v35, %v53
  %vm66 = vcmp.eq.s32.totalorder %v35, %v56
  %vm67 = vcmp.eq.s32.totalorder %v35, %v59
  %v68 = vsel %vm60, 1, 0
  %v69 = vsel %vm61, 1, 0
  %v70 = vsel %vm62, 1, 0
  %v71 = vsel %vm63, 1, 0
  %v72 = vsel %vm64, 1, 0
  %v73 = vsel %vm65, 1, 0
  %v74 = vsel %vm66, 1, 0
  %v75 = vsel %vm67, 1, 0
  %v76 = vcvt.s32.f32 %v68
  %v77 = vcvt.s32.f32 %v69
  %v78 = vcvt.s32.f32 %v70
  %v79 = vcvt.s32.f32 %v71
  %v80 = vcvt.s32.f32 %v72
  %v81 = vcvt.s32.f32 %v73
  %v82 = vcvt.s32.f32 %v74
  %v83 = vcvt.s32.f32 %v75
  %v84 = vld [vmem:[%s1] sm:$0xff]
  %v85 = vld [vmem:[%s1 + $0x8] sm:$0xff]
  %v86 = vld [vmem:[%s1 + $0x10] sm:$0xff]
  %v87 = vld [vmem:[%s1 + $0x18] sm:$0xff]
  %v88 = vld [vmem:[%s1 + $0x20] sm:$0xff]
  %v89 = vld [vmem:[%s1 + $0x28] sm:$0xff]
  %v90 = vld [vmem:[%s1 + $0x30] sm:$0x3]
  %vm91 = vcmask 408576
  %v93 = vsel %vm91, %v76, 0
  %v96 = vsel %vm91, %v77, 0
  %v99 = vsel %vm91, %v78, 0
  %v102 = vsel %vm91, %v79, 0
  %v105 = vsel %vm91, %v80, 0
  %v108 = vsel %vm91, %v81, 0
  %v111 = vsel %vm91, %v82, 0
  %v114 = vsel %vm91, %v83, 0
  %vm116 = vcmask 1041408
  %v118 = vsel %vm116, %v90, 0
  %120 = vmatpush.msra.mxu0 0.0
  %121 = vmatpush.msra.mxu0 0.0
  %122 = vmatpush.msra.mxu0 0.0
  %123 = vmatpush.msra.mxu0 0.0
  %124 = vmatpush.msra.mxu0 0.0
  %125 = vmatpush.msra.mxu0 0.0
  %126 = vmatpush.msra.mxu0 0.0
  %127 = vmatpush.msra.mxu0 0.0
  %128 = vmatpush.msra.mxu0 0.0
  %129 = vmatpush.msra.mxu0 %v118
  %130 = vmatpush.msra.mxu0 %v89
  %131 = vmatpush.msra.mxu0 %v88
  %132 = vmatpush.msra.mxu0 %v87
  %133 = vmatpush.msra.mxu0 %v86
  %134 = vmatpush.msra.mxu0 %v85
  %135 = vmatpush.msra.mxu0 %v84
  %136 = vmatmul.f32.gmra.mxu0 %v93
  %v137 = vpop.f32.mrf.mxu0
  %v138 = vadd.f32 0.0, %v137
  %139 = vmatmul.f32.gmra.mxu0 %v96
  %v140 = vpop.f32.mrf.mxu0
  %v141 = vadd.f32 0.0, %v140
  %142 = vmatmul.f32.gmra.mxu0 %v99
  %v143 = vpop.f32.mrf.mxu0
  %v144 = vadd.f32 0.0, %v143
  %145 = vmatmul.f32.gmra.mxu0 %v102
  %v146 = vpop.f32.mrf.mxu0
  %v147 = vadd.f32 0.0, %v146
  %148 = vmatmul.f32.gmra.mxu0 %v105
  %v149 = vpop.f32.mrf.mxu0
  %v150 = vadd.f32 0.0, %v149
  %151 = vmatmul.f32.gmra.mxu0 %v108
  %v152 = vpop.f32.mrf.mxu0
  %v153 = vadd.f32 0.0, %v152
  %154 = vmatmul.f32.gmra.mxu0 %v111
  %v155 = vpop.f32.mrf.mxu0
  %v156 = vadd.f32 0.0, %v155
  %157 = vmatmul.f32.gmra.mxu0 %v114
  %v158 = vpop.f32.mrf.mxu0
  %v159 = vadd.f32 0.0, %v158
  %160 = vdwg.mxu0
  %v161 = vld [vmem:[%s2] sm:$0xff]
  %v162 = vld [vmem:[%s2 + $0x8] sm:$0xff]
  %v163 = vld [vmem:[%s2 + $0x10] sm:$0xff]
  %v164 = vld [vmem:[%s2 + $0x18] sm:$0xff]
  %v165 = vld [vmem:[%s4] sm:$0x1]
  %v167 = vperm.slane %v165, 0
  %vm169 = vcmask 261120
  %v171 = vsel %vm169, %v138, 0
  %v174 = vsel %vm169, %v141, 0
  %v177 = vsel %vm169, %v144, 0
  %v180 = vsel %vm169, %v147, 0
  %v183 = vsel %vm169, %v150, 0
  %v186 = vsel %vm169, %v153, 0
  %v189 = vsel %vm169, %v156, 0
  %v192 = vsel %vm169, %v159, 0
  %194 = vmatpush.msra.mxu0 0.0
  %195 = vmatpush.msra.mxu0 0.0
  %196 = vmatpush.msra.mxu0 0.0
  %197 = vmatpush.msra.mxu0 0.0
  %198 = vmatpush.msra.mxu0 0.0
  %199 = vmatpush.msra.mxu0 0.0
  %200 = vmatpush.msra.mxu0 0.0
  %201 = vmatpush.msra.mxu0 0.0
  %202 = vmatpush.msra.mxu0 0.0
  %203 = vmatpush.msra.mxu0 0.0
  %204 = vmatpush.msra.mxu0 0.0
  %205 = vmatpush.msra.mxu0 0.0
  %206 = vmatpush.msra.mxu0 %v164
  %207 = vmatpush.msra.mxu0 %v163
  %208 = vmatpush.msra.mxu0 %v162
  %209 = vmatpush.msra.mxu0 %v161
  %210 = vmatmul.f32.gmra.mxu0 %v171
  %v211 = vpop.f32.mrf.mxu0
  %v212 = vadd.f32 %v167, %v211
  %213 = vmatmul.f32.gmra.mxu0 %v174
  %v214 = vpop.f32.mrf.mxu0
  %v215 = vadd.f32 %v167, %v214
  %216 = vmatmul.f32.gmra.mxu0 %v177
  %v217 = vpop.f32.mrf.mxu0
  %v218 = vadd.f32 %v167, %v217
  %219 = vmatmul.f32.gmra.mxu0 %v180
  %v220 = vpop.f32.mrf.mxu0
  %v221 = vadd.f32 %v167, %v220
  %222 = vmatmul.f32.gmra.mxu0 %v183
  %v223 = vpop.f32.mrf.mxu0
  %v224 = vadd.f32 %v167, %v223
  %225 = vmatmul.f32.gmra.mxu0 %v186
  %v226 = vpop.f32.mrf.mxu0
  %v227 = vadd.f32 %v167, %v226
  %228 = vmatmul.f32.gmra.mxu0 %v189
  %v229 = vpop.f32.mrf.mxu0
  %v230 = vadd.f32 %v167, %v229
  %231 = vmatmul.f32.gmra.mxu0 %v192
  %v232 = vpop.f32.mrf.mxu0
  %v233 = vadd.f32 %v167, %v232
  %234 = vdwg.mxu0
  %v235 = vld [vmem:[%s3] sm:$0xff]
  %v236 = vld [vmem:[%s3 + $0x8] sm:$0xff]
  %v237 = vld [vmem:[%s3 + $0x10] sm:$0xff]
  %v238 = vld [vmem:[%s3 + $0x18] sm:$0xff]
  %v240 = vsel %vm169, 0.0, 0
  %242 = vmatpush.msra.mxu0 0.0
  %243 = vmatpush.msra.mxu0 0.0
  %244 = vmatpush.msra.mxu0 0.0
  %245 = vmatpush.msra.mxu0 0.0
  %246 = vmatpush.msra.mxu0 0.0
  %247 = vmatpush.msra.mxu0 0.0
  %248 = vmatpush.msra.mxu0 0.0
  %249 = vmatpush.msra.mxu0 0.0
  %250 = vmatpush.msra.mxu0 0.0
  %251 = vmatpush.msra.mxu0 0.0
  %252 = vmatpush.msra.mxu0 0.0
  %253 = vmatpush.msra.mxu0 0.0
  %254 = vmatpush.msra.mxu0 %v238
  %255 = vmatpush.msra.mxu0 %v237
  %256 = vmatpush.msra.mxu0 %v236
  %257 = vmatpush.msra.mxu0 %v235
  %258 = vmatmul.f32.gmra.mxu0 %v240
  %v259 = vpop.f32.mrf.mxu0
  %v260 = vadd.f32 0.0, %v259
  %261 = vdwg.mxu0
  %v262 = vadd.f32 %v212, %v260
  %v263 = vxor.u32 %v262, 2147483648
  %v264 = vmul.f32 %v263, 1.442695
  %v265 = vpow.pop %v264
  %v266 = vadd.f32 %v265, 1.0
  %v267 = vrcp.pop %v266
  %v268 = vmul.f32 %v266, %v267
  %v269 = vsub.f32 1.0, %v268
  %v270 = vmul.f32 %v267, %v269
  %v271 = vadd.f32 %v267, %v270
  %vm272 = vweird.f32 %v266
  %vm273 = vweird.f32 %v267
  %vm274 = vmor %vm272, %vm273
  %v275 = vsel %vm274, %v267, %v271
  %v276 = vand.u32 2147483647, %v266
  %vm277 = vcmp.eq.f32.partialorder %v276, 8.507059e+37
  %v278 = vand.u32 %v266, 2147483648
  %v279 = vor.u32 1.1754944e-38, %v278
  %v280 = vsel %vm277, %v279, %v275
  %v281 = vmul.f32 1.0, %v280
  %v282 = vtanh.pop %v262
  %v283 = vmul.f32 %v281, 0.0
  %285 = vrot.lane.b32.xlu0 %v282, 64
  %v286 = vpop.permute.xlu0 %285
  %v288 = vmul.f32 %v281, %v286
  %290 = vrot.lane.b32.xlu0 %v288, 32
  %v291 = vpop.permute.xlu0 %290
  %v293 = vadd.f32 %v283, %v291
  %v294 = vtanh.pop %v293
  %296 = vrot.lane.b32.xlu0 %v294, 64
  %v297 = vpop.permute.xlu0 %296
  %v299 = vmul.f32 %v281, %v297
  %301 = vrot.lane.b32.xlu0 %v299, 32
  %v302 = vpop.permute.xlu0 %301
  %v303 = vsel %vm169, %v302, 0
  %305 = vmatpush.msra.mxu0 0.0
  %306 = vmatpush.msra.mxu0 0.0
  %307 = vmatpush.msra.mxu0 0.0
  %308 = vmatpush.msra.mxu0 0.0
  %309 = vmatpush.msra.mxu0 0.0
  %310 = vmatpush.msra.mxu0 0.0
  %311 = vmatpush.msra.mxu0 0.0
  %312 = vmatpush.msra.mxu0 0.0
  %313 = vmatpush.msra.mxu0 0.0
  %314 = vmatpush.msra.mxu0 0.0
  %315 = vmatpush.msra.mxu0 0.0
  %316 = vmatpush.msra.mxu0 0.0
  %317 = vmatpush.msra.mxu0 %v238
  %318 = vmatpush.msra.mxu0 %v237
  %319 = vmatpush.msra.mxu0 %v236
  %320 = vmatpush.msra.mxu0 %v235
  %321 = vmatmul.f32.gmra.mxu0 %v303
  %v322 = vpop.f32.mrf.mxu0
  %v323 = vadd.f32 0.0, %v322
  %324 = vdwg.mxu0
  %v325 = vadd.f32 %v215, %v323
  %v326 = vxor.u32 %v325, 2147483648
  %v327 = vmul.f32 %v326, 1.442695
  %v328 = vpow.pop %v327
  %v329 = vadd.f32 %v328, 1.0
  %v330 = vrcp.pop %v329
  %v331 = vmul.f32 %v329, %v330
  %v332 = vsub.f32 1.0, %v331
  %v333 = vmul.f32 %v330, %v332
  %v334 = vadd.f32 %v330, %v333
  %vm335 = vweird.f32 %v329
  %vm336 = vweird.f32 %v330
  %vm337 = vmor %vm335, %vm336
  %v338 = vsel %vm337, %v330, %v334
  %v339 = vand.u32 2147483647, %v329
  %vm340 = vcmp.eq.f32.partialorder %v339, 8.507059e+37
  %v341 = vand.u32 %v329, 2147483648
  %v342 = vor.u32 1.1754944e-38, %v341
  %v343 = vsel %vm340, %v342, %v338
  %v344 = vmul.f32 1.0, %v343
  %v345 = vtanh.pop %v325
  %v346 = vmul.f32 %v344, %v293
  %348 = vrot.lane.b32.xlu0 %v345, 64
  %v349 = vpop.permute.xlu0 %348
  %v351 = vmul.f32 %v344, %v349
  %353 = vrot.lane.b32.xlu0 %v351, 32
  %v354 = vpop.permute.xlu0 %353
  %v356 = vadd.f32 %v346, %v354
  %v357 = vtanh.pop %v356
  %359 = vrot.lane.b32.xlu0 %v357, 64
  %v360 = vpop.permute.xlu0 %359
  %v362 = vmul.f32 %v344, %v360
  %364 = vrot.lane.b32.xlu0 %v362, 32
  %v365 = vpop.permute.xlu0 %364
  %v366 = vsel %vm169, %v365, 0
  %368 = vmatpush.msra.mxu0 0.0
  %369 = vmatpush.msra.mxu0 0.0
  %370 = vmatpush.msra.mxu0 0.0
  %371 = vmatpush.msra.mxu0 0.0
  %372 = vmatpush.msra.mxu0 0.0
  %373 = vmatpush.msra.mxu0 0.0
  %374 = vmatpush.msra.mxu0 0.0
  %375 = vmatpush.msra.mxu0 0.0
  %376 = vmatpush.msra.mxu0 0.0
  %377 = vmatpush.msra.mxu0 0.0
  %378 = vmatpush.msra.mxu0 0.0
  %379 = vmatpush.msra.mxu0 0.0
  %380 = vmatpush.msra.mxu0 %v238
  %381 = vmatpush.msra.mxu0 %v237
  %382 = vmatpush.msra.mxu0 %v236
  %383 = vmatpush.msra.mxu0 %v235
  %384 = vmatmul.f32.gmra.mxu0 %v366
  %v385 = vpop.f32.mrf.mxu0
  %v386 = vadd.f32 0.0, %v385
  %387 = vdwg.mxu0
  %v388 = vadd.f32 %v218, %v386
  %v389 = vxor.u32 %v388, 2147483648
  %v390 = vmul.f32 %v389, 1.442695
  %v391 = vpow.pop %v390
  %v392 = vadd.f32 %v391, 1.0
  %v393 = vrcp.pop %v392
  %v394 = vmul.f32 %v392, %v393
  %v395 = vsub.f32 1.0, %v394
  %v396 = vmul.f32 %v393, %v395
  %v397 = vadd.f32 %v393, %v396
  %vm398 = vweird.f32 %v392
  %vm399 = vweird.f32 %v393
  %vm400 = vmor %vm398, %vm399
  %v401 = vsel %vm400, %v393, %v397
  %v402 = vand.u32 2147483647, %v392
  %vm403 = vcmp.eq.f32.partialorder %v402, 8.507059e+37
  %v404 = vand.u32 %v392, 2147483648
  %v405 = vor.u32 1.1754944e-38, %v404
  %v406 = vsel %vm403, %v405, %v401
  %v407 = vmul.f32 1.0, %v406
  %v408 = vtanh.pop %v388
  %v409 = vmul.f32 %v407, %v356
  %411 = vrot.lane.b32.xlu0 %v408, 64
  %v412 = vpop.permute.xlu0 %411
  %v414 = vmul.f32 %v407, %v412
  %416 = vrot.lane.b32.xlu0 %v414, 32
  %v417 = vpop.permute.xlu0 %416
  %v419 = vadd.f32 %v409, %v417
  %v420 = vtanh.pop %v419
  %422 = vrot.lane.b32.xlu0 %v420, 64
  %v423 = vpop.permute.xlu0 %422
  %v425 = vmul.f32 %v407, %v423
  %427 = vrot.lane.b32.xlu0 %v425, 32
  %v428 = vpop.permute.xlu0 %427
  %v429 = vsel %vm169, %v428, 0
  %431 = vmatpush.msra.mxu0 0.0
  %432 = vmatpush.msra.mxu0 0.0
  %433 = vmatpush.msra.mxu0 0.0
  %434 = vmatpush.msra.mxu0 0.0
  %435 = vmatpush.msra.mxu0 0.0
  %436 = vmatpush.msra.mxu0 0.0
  %437 = vmatpush.msra.mxu0 0.0
  %438 = vmatpush.msra.mxu0 0.0
  %439 = vmatpush.msra.mxu0 0.0
  %440 = vmatpush.msra.mxu0 0.0
  %441 = vmatpush.msra.mxu0 0.0
  %442 = vmatpush.msra.mxu0 0.0
  %443 = vmatpush.msra.mxu0 %v238
  %444 = vmatpush.msra.mxu0 %v237
  %445 = vmatpush.msra.mxu0 %v236
  %446 = vmatpush.msra.mxu0 %v235
  %447 = vmatmul.f32.gmra.mxu0 %v429
  %v448 = vpop.f32.mrf.mxu0
  %v449 = vadd.f32 0.0, %v448
  %450 = vdwg.mxu0
  %v451 = vadd.f32 %v221, %v449
  %v452 = vxor.u32 %v451, 2147483648
  %v453 = vmul.f32 %v452, 1.442695
  %v454 = vpow.pop %v453
  %v455 = vadd.f32 %v454, 1.0
  %v456 = vrcp.pop %v455
  %v457 = vmul.f32 %v455, %v456
  %v458 = vsub.f32 1.0, %v457
  %v459 = vmul.f32 %v456, %v458
  %v460 = vadd.f32 %v456, %v459
  %vm461 = vweird.f32 %v455
  %vm462 = vweird.f32 %v456
  %vm463 = vmor %vm461, %vm462
  %v464 = vsel %vm463, %v456, %v460
  %v465 = vand.u32 2147483647, %v455
  %vm466 = vcmp.eq.f32.partialorder %v465, 8.507059e+37
  %v467 = vand.u32 %v455, 2147483648
  %v468 = vor.u32 1.1754944e-38, %v467
  %v469 = vsel %vm466, %v468, %v464
  %v470 = vmul.f32 1.0, %v469
  %v471 = vtanh.pop %v451
  %v472 = vmul.f32 %v470, %v419
  %474 = vrot.lane.b32.xlu0 %v471, 64
  %v475 = vpop.permute.xlu0 %474
  %v477 = vmul.f32 %v470, %v475
  %479 = vrot.lane.b32.xlu0 %v477, 32
  %v480 = vpop.permute.xlu0 %479
  %v482 = vadd.f32 %v472, %v480
  %v483 = vtanh.pop %v482
  %485 = vrot.lane.b32.xlu0 %v483, 64
  %v486 = vpop.permute.xlu0 %485
  %v488 = vmul.f32 %v470, %v486
  %490 = vrot.lane.b32.xlu0 %v488, 32
  %v491 = vpop.permute.xlu0 %490
  %v492 = vsel %vm169, %v491, 0
  %494 = vmatpush.msra.mxu0 0.0
  %495 = vmatpush.msra.mxu0 0.0
  %496 = vmatpush.msra.mxu0 0.0
  %497 = vmatpush.msra.mxu0 0.0
  %498 = vmatpush.msra.mxu0 0.0
  %499 = vmatpush.msra.mxu0 0.0
  %500 = vmatpush.msra.mxu0 0.0
  %501 = vmatpush.msra.mxu0 0.0
  %502 = vmatpush.msra.mxu0 0.0
  %503 = vmatpush.msra.mxu0 0.0
  %504 = vmatpush.msra.mxu0 0.0
  %505 = vmatpush.msra.mxu0 0.0
  %506 = vmatpush.msra.mxu0 %v238
  %507 = vmatpush.msra.mxu0 %v237
  %508 = vmatpush.msra.mxu0 %v236
  %509 = vmatpush.msra.mxu0 %v235
  %510 = vmatmul.f32.gmra.mxu0 %v492
  %v511 = vpop.f32.mrf.mxu0
  %v512 = vadd.f32 0.0, %v511
  %513 = vdwg.mxu0
  %v514 = vadd.f32 %v224, %v512
  %v515 = vxor.u32 %v514, 2147483648
  %v516 = vmul.f32 %v515, 1.442695
  %v517 = vpow.pop %v516
  %v518 = vadd.f32 %v517, 1.0
  %v519 = vrcp.pop %v518
  %v520 = vmul.f32 %v518, %v519
  %v521 = vsub.f32 1.0, %v520
  %v522 = vmul.f32 %v519, %v521
  %v523 = vadd.f32 %v519, %v522
  %vm524 = vweird.f32 %v518
  %vm525 = vweird.f32 %v519
  %vm526 = vmor %vm524, %vm525
  %v527 = vsel %vm526, %v519, %v523
  %v528 = vand.u32 2147483647, %v518
  %vm529 = vcmp.eq.f32.partialorder %v528, 8.507059e+37
  %v530 = vand.u32 %v518, 2147483648
  %v531 = vor.u32 1.1754944e-38, %v530
  %v532 = vsel %vm529, %v531, %v527
  %v533 = vmul.f32 1.0, %v532
  %v534 = vtanh.pop %v514
  %v535 = vmul.f32 %v533, %v482
  %537 = vrot.lane.b32.xlu0 %v534, 64
  %v538 = vpop.permute.xlu0 %537
  %v540 = vmul.f32 %v533, %v538
  %542 = vrot.lane.b32.xlu0 %v540, 32
  %v543 = vpop.permute.xlu0 %542
  %v545 = vadd.f32 %v535, %v543
  %v546 = vtanh.pop %v545
  %548 = vrot.lane.b32.xlu0 %v546, 64
  %v549 = vpop.permute.xlu0 %548
  %v551 = vmul.f32 %v533, %v549
  %553 = vrot.lane.b32.xlu0 %v551, 32
  %v554 = vpop.permute.xlu0 %553
  %v555 = vsel %vm169, %v554, 0
  %557 = vmatpush.msra.mxu0 0.0
  %558 = vmatpush.msra.mxu0 0.0
  %559 = vmatpush.msra.mxu0 0.0
  %560 = vmatpush.msra.mxu0 0.0
  %561 = vmatpush.msra.mxu0 0.0
  %562 = vmatpush.msra.mxu0 0.0
  %563 = vmatpush.msra.mxu0 0.0
  %564 = vmatpush.msra.mxu0 0.0
  %565 = vmatpush.msra.mxu0 0.0
  %566 = vmatpush.msra.mxu0 0.0
  %567 = vmatpush.msra.mxu0 0.0
  %568 = vmatpush.msra.mxu0 0.0
  %569 = vmatpush.msra.mxu0 %v238
  %570 = vmatpush.msra.mxu0 %v237
  %571 = vmatpush.msra.mxu0 %v236
  %572 = vmatpush.msra.mxu0 %v235
  %573 = vmatmul.f32.gmra.mxu0 %v555
  %v574 = vpop.f32.mrf.mxu0
  %v575 = vadd.f32 0.0, %v574
  %576 = vdwg.mxu0
  %v577 = vadd.f32 %v227, %v575
  %v578 = vxor.u32 %v577, 2147483648
  %v579 = vmul.f32 %v578, 1.442695
  %v580 = vpow.pop %v579
  %v581 = vadd.f32 %v580, 1.0
  %v582 = vrcp.pop %v581
  %v583 = vmul.f32 %v581, %v582
  %v584 = vsub.f32 1.0, %v583
  %v585 = vmul.f32 %v582, %v584
  %v586 = vadd.f32 %v582, %v585
  %vm587 = vweird.f32 %v581
  %vm588 = vweird.f32 %v582
  %vm589 = vmor %vm587, %vm588
  %v590 = vsel %vm589, %v582, %v586
  %v591 = vand.u32 2147483647, %v581
  %vm592 = vcmp.eq.f32.partialorder %v591, 8.507059e+37
  %v593 = vand.u32 %v581, 2147483648
  %v594 = vor.u32 1.1754944e-38, %v593
  %v595 = vsel %vm592, %v594, %v590
  %v596 = vmul.f32 1.0, %v595
  %v597 = vtanh.pop %v577
  %v598 = vmul.f32 %v596, %v545
  %600 = vrot.lane.b32.xlu0 %v597, 64
  %v601 = vpop.permute.xlu0 %600
  %v603 = vmul.f32 %v596, %v601
  %605 = vrot.lane.b32.xlu0 %v603, 32
  %v606 = vpop.permute.xlu0 %605
  %v608 = vadd.f32 %v598, %v606
  %v609 = vtanh.pop %v608
  %611 = vrot.lane.b32.xlu0 %v609, 64
  %v612 = vpop.permute.xlu0 %611
  %v614 = vmul.f32 %v596, %v612
  %616 = vrot.lane.b32.xlu0 %v614, 32
  %v617 = vpop.permute.xlu0 %616
  %v618 = vsel %vm169, %v617, 0
  %620 = vmatpush.msra.mxu0 0.0
  %621 = vmatpush.msra.mxu0 0.0
  %622 = vmatpush.msra.mxu0 0.0
  %623 = vmatpush.msra.mxu0 0.0
  %624 = vmatpush.msra.mxu0 0.0
  %625 = vmatpush.msra.mxu0 0.0
  %626 = vmatpush.msra.mxu0 0.0
  %627 = vmatpush.msra.mxu0 0.0
  %628 = vmatpush.msra.mxu0 0.0
  %629 = vmatpush.msra.mxu0 0.0
  %630 = vmatpush.msra.mxu0 0.0
  %631 = vmatpush.msra.mxu0 0.0
  %632 = vmatpush.msra.mxu0 %v238
  %633 = vmatpush.msra.mxu0 %v237
  %634 = vmatpush.msra.mxu0 %v236
  %635 = vmatpush.msra.mxu0 %v235
  %636 = vmatmul.f32.gmra.mxu0 %v618
  %v637 = vpop.f32.mrf.mxu0
  %v638 = vadd.f32 0.0, %v637
  %639 = vdwg.mxu0
  %v640 = vadd.f32 %v230, %v638
  %v641 = vxor.u32 %v640, 2147483648
  %v642 = vmul.f32 %v641, 1.442695
  %v643 = vpow.pop %v642
  %v644 = vadd.f32 %v643, 1.0
  %v645 = vrcp.pop %v644
  %v646 = vmul.f32 %v644, %v645
  %v647 = vsub.f32 1.0, %v646
  %v648 = vmul.f32 %v645, %v647
  %v649 = vadd.f32 %v645, %v648
  %vm650 = vweird.f32 %v644
  %vm651 = vweird.f32 %v645
  %vm652 = vmor %vm650, %vm651
  %v653 = vsel %vm652, %v645, %v649
  %v654 = vand.u32 2147483647, %v644
  %vm655 = vcmp.eq.f32.partialorder %v654, 8.507059e+37
  %v656 = vand.u32 %v644, 2147483648
  %v657 = vor.u32 1.1754944e-38, %v656
  %v658 = vsel %vm655, %v657, %v653
  %v659 = vmul.f32 1.0, %v658
  %v660 = vtanh.pop %v640
  %v661 = vmul.f32 %v659, %v608
  %663 = vrot.lane.b32.xlu0 %v660, 64
  %v664 = vpop.permute.xlu0 %663
  %v666 = vmul.f32 %v659, %v664
  %668 = vrot.lane.b32.xlu0 %v666, 32
  %v669 = vpop.permute.xlu0 %668
  %v671 = vadd.f32 %v661, %v669
  %v672 = vtanh.pop %v671
  %674 = vrot.lane.b32.xlu0 %v672, 64
  %v675 = vpop.permute.xlu0 %674
  %v677 = vmul.f32 %v659, %v675
  %679 = vrot.lane.b32.xlu0 %v677, 32
  %v680 = vpop.permute.xlu0 %679
  %v681 = vsel %vm169, %v680, 0
  %683 = vmatpush.msra.mxu0 0.0
  %684 = vmatpush.msra.mxu0 0.0
  %685 = vmatpush.msra.mxu0 0.0
  %686 = vmatpush.msra.mxu0 0.0
  %687 = vmatpush.msra.mxu0 0.0
  %688 = vmatpush.msra.mxu0 0.0
  %689 = vmatpush.msra.mxu0 0.0
  %690 = vmatpush.msra.mxu0 0.0
  %691 = vmatpush.msra.mxu0 0.0
  %692 = vmatpush.msra.mxu0 0.0
  %693 = vmatpush.msra.mxu0 0.0
  %694 = vmatpush.msra.mxu0 0.0
  %695 = vmatpush.msra.mxu0 %v238
  %696 = vmatpush.msra.mxu0 %v237
  %697 = vmatpush.msra.mxu0 %v236
  %698 = vmatpush.msra.mxu0 %v235
  %699 = vmatmul.f32.gmra.mxu0 %v681
  %v700 = vpop.f32.mrf.mxu0
  %v701 = vadd.f32 0.0, %v700
  %702 = vdwg.mxu0
  %v703 = vadd.f32 %v233, %v701
  %v704 = vxor.u32 %v703, 2147483648
  %v705 = vmul.f32 %v704, 1.442695
  %v706 = vpow.pop %v705
  %v707 = vadd.f32 %v706, 1.0
  %v708 = vrcp.pop %v707
  %v709 = vmul.f32 %v707, %v708
  %v710 = vsub.f32 1.0, %v709
  %v711 = vmul.f32 %v708, %v710
  %v712 = vadd.f32 %v708, %v711
  %vm713 = vweird.f32 %v707
  %vm714 = vweird.f32 %v708
  %vm715 = vmor %vm713, %vm714
  %v716 = vsel %vm715, %v708, %v712
  %v717 = vand.u32 2147483647, %v707
  %vm718 = vcmp.eq.f32.partialorder %v717, 8.507059e+37
  %v719 = vand.u32 %v707, 2147483648
  %v720 = vor.u32 1.1754944e-38, %v719
  %v721 = vsel %vm718, %v720, %v716
  %v722 = vmul.f32 1.0, %v721
  %v723 = vtanh.pop %v703
  %v724 = vmul.f32 %v722, %v671
  %726 = vrot.lane.b32.xlu0 %v723, 64
  %v727 = vpop.permute.xlu0 %726
  %v729 = vmul.f32 %v722, %v727
  %731 = vrot.lane.b32.xlu0 %v729, 32
  %v732 = vpop.permute.xlu0 %731
  %v734 = vadd.f32 %v724, %v732
  %v735 = vtanh.pop %v734
  %737 = vrot.lane.b32.xlu0 %v735, 64
  %v738 = vpop.permute.xlu0 %737
  %v740 = vmul.f32 %v722, %v738
  %v741 = vld [vmem:[%s5] sm:$0xff]
  %v742 = vld [vmem:[%s5 + $0x8] sm:$0xff]
  %v743 = vld [vmem:[%s5 + $0x10] sm:$0xff]
  %v744 = vld [vmem:[%s5 + $0x18] sm:$0xff]
  %v745 = vld [vmem:[%s6] sm:$0x1]
  %v747 = vperm.slane %v745, 0
  %750 = vrot.lane.b32.xlu0 %v740, 32
  %v751 = vpop.permute.xlu0 %750
  %v752 = vsel %vm169, %v751, 0
  %754 = vmatpush.msra.mxu0 0.0
  %755 = vmatpush.msra.mxu0 0.0
  %756 = vmatpush.msra.mxu0 0.0
  %757 = vmatpush.msra.mxu0 0.0
  %758 = vmatpush.msra.mxu0 0.0
  %759 = vmatpush.msra.mxu0 0.0
  %760 = vmatpush.msra.mxu0 0.0
  %761 = vmatpush.msra.mxu0 0.0
  %762 = vmatpush.msra.mxu0 0.0
  %763 = vmatpush.msra.mxu0 0.0
  %764 = vmatpush.msra.mxu0 0.0
  %765 = vmatpush.msra.mxu0 0.0
  %766 = vmatpush.msra.mxu0 %v744
  %767 = vmatpush.msra.mxu0 %v743
  %768 = vmatpush.msra.mxu0 %v742
  %769 = vmatpush.msra.mxu0 %v741
  %770 = vmatmul.f32.gmra.mxu0 %v752
  %v771 = vpop.f32.mrf.mxu0
  %v772 = vadd.f32 %v747, %v771
  %773 = vdwg.mxu0
  %vm774 = vcmask 31744
  %775 = vst.msk [vmem:[%s7] sm:$0xff] %vm774, %v772
  // Predicated region
  $region30: #{tpu_custom_call.1} parent=0 // pred_check
    _
  $region31: #{tpu_custom_call.1} parent=0 // pred_check_branch
    %777 = sbr.rel (0) target = $region33
  $region32: #{tpu_custom_call.1} parent=0 // pred_region
    _
  $region33: #{tpu_custom_call.1} parent=0 // pred_fallthru
    _
  // Predicated region
  $region34: #{tpu_custom_call.1} parent=0 // pred_check
    _
  $region35: #{tpu_custom_call.1} parent=0 // pred_check_branch
    %779 = sbr.rel (0) target = $region37
  $region36: #{tpu_custom_call.1} parent=0 // pred_region
    _
  $region37: #{tpu_custom_call.1} parent=0 // pred_fallthru
    _

</llo_original>
